<compile_context>
chip_gen: v6e
topology: v6e:2x2x1
jax: 0.10.0
libtpu: 0.0.40
codegen_flags: <defaults>
</compile_context>

<pallas_src>
import functools

import jax
import jax.numpy as jnp
from jax import lax
from jax.experimental import pallas as pl
from jax.experimental.pallas import tpu as pltpu


def encoder_tail_kernel(feat_ref, w_ref, b_ref, gamma_ref, beta_ref,
                        out_ref, acc_ref, *, inv_s, eps):
    # feat_ref : (B, S, TC) stream_dtype -- layer4 feature map, channel-last tile
    # w_ref    : (TC, E)    stream_dtype -- embed weight tile (PyTorch weight.T)
    # b_ref    : (1, E)     f32          -- embed bias
    # gamma_ref: (1, E)     f32          -- BatchNorm1d weight
    # beta_ref : (1, E)     f32          -- BatchNorm1d bias
    # out_ref  : (B, E)     f32
    # acc_ref  : (B, E)     f32 VMEM scratch (partial Linear accumulator)
    k = pl.program_id(0)

    @pl.when(k == 0)
    def _init():
        acc_ref[...] = jnp.zeros_like(acc_ref)

    # Spatial sum over S (the 1/S of AdaptiveAvgPool2d is folded into the
    # finalize step).  Upcast to f32 before reducing (v5e has no bf16 VPU).
    feat = feat_ref[...].astype(jnp.float32)               # (B, S, TC)
    pooled = jnp.sum(feat, axis=1)                         # (B, TC)

    # Partial Linear: (B, TC) @ (TC, E) on the MXU, f32 accumulation.
    acc_ref[...] += jnp.dot(pooled, w_ref[...].astype(jnp.float32),
                            preferred_element_type=jnp.float32)

    @pl.when(k == pl.num_programs(0) - 1)
    def _finalize():
        # Finish avg-pool (single scale), add bias.
        z = acc_ref[...] * inv_s + b_ref[...]              # (B, E)
        # BatchNorm1d, training-mode forward: batch stats, biased variance.
        mu = jnp.mean(z, axis=0, keepdims=True)            # (1, E)
        d = z - mu
        var = jnp.mean(d * d, axis=0, keepdims=True)
        z_hat = d * lax.rsqrt(var + eps)
        out_ref[...] = (gamma_ref[...] * z_hat + beta_ref[...]).astype(out_ref.dtype)


def _pick_tc(C, B, S, itemsize, budget_bytes=8 << 20, max_tc=512):
    """Largest C tile (multiple of 128, dividing C, <= max_tc) whose
    double-buffered feat block stays under budget_bytes."""
    if C % 128 != 0:
        return C                      # small / irregular C: single full block
    best = 128
    tc = 128
    while tc <= min(C, max_tc):
        if C % tc == 0 and 2 * B * S * tc * itemsize <= budget_bytes:
            best = tc
        tc += 128
    return best


def encoder_cnn_tail(feat_map_nchw, w_t, b, gamma, beta, *,
                     tc=None, stream_dtype=jnp.bfloat16, eps=1e-5):
    """feat_map_nchw: (B, C, H, W) layer4 feature map (NCHW, like PyTorch).
    w_t: (C, E) embed weight transposed.  Returns (1, B, E) float32."""
    B, C, H, W = feat_map_nchw.shape
    S = H * W
    E = w_t.shape[1]
    itemsize = jnp.dtype(stream_dtype).itemsize

    # NCHW -> (B, S, C): lane-dense channel-last layout for the kernel.
    # (In a full model the ResNet trunk would emit this layout directly.)
    feat = jnp.transpose(feat_map_nchw, (0, 2, 3, 1)).reshape(B, S, C)
    feat = feat.astype(stream_dtype)
    w = w_t.astype(stream_dtype)

    b2 = b.reshape(1, E).astype(jnp.float32)
    gamma2 = gamma.reshape(1, E).astype(jnp.float32)
    beta2 = beta.reshape(1, E).astype(jnp.float32)

    if tc is None:
        tc = _pick_tc(C, B, S, itemsize)
    assert C % tc == 0, (C, tc)
    grid = (C // tc,)

    kernel = functools.partial(encoder_tail_kernel, inv_s=1.0 / S, eps=eps)

    out = pl.pallas_call(
        kernel,
        out_shape=jax.ShapeDtypeStruct((B, E), jnp.float32),
        grid_spec=pltpu.PrefetchScalarGridSpec(
            num_scalar_prefetch=0,
            grid=grid,
            in_specs=[
                pl.BlockSpec((B, S, tc), lambda k: (0, 0, k)),   # feat tile
                pl.BlockSpec((tc, E), lambda k: (k, 0)),         # weight tile
                pl.BlockSpec((1, E), lambda k: (0, 0)),          # bias
                pl.BlockSpec((1, E), lambda k: (0, 0)),          # gamma
                pl.BlockSpec((1, E), lambda k: (0, 0)),          # beta
            ],
            out_specs=pl.BlockSpec((B, E), lambda k: (0, 0)),
            scratch_shapes=[pltpu.VMEM((B, E), jnp.float32)],
        ),
        compiler_params=pltpu.CompilerParams(
            dimension_semantics=("arbitrary",),      # C axis is a reduction
            vmem_limit_bytes=32 * 1024 * 1024,
        ),
        cost_estimate=pl.CostEstimate(
            flops=2 * B * C * E + B * S * C + 8 * B * E,
            transcendentals=E,
            bytes_accessed=(B * S * C + C * E) * itemsize + (3 + B) * E * 4,
        ),
    )(feat, w, b2, gamma2, beta2)

    return out[None, :, :]                                    # unsqueeze(0)


def encoder_cnn_tail_ref(feat_map_nchw, w_t, b, gamma, beta, eps=1e-5):
    """Pure-JAX f32 reference (avg-pool -> Linear -> train-mode BatchNorm1d)."""
    B, C, H, W = feat_map_nchw.shape
    pooled = jnp.mean(feat_map_nchw.reshape(B, C, H * W), axis=-1)
    z = pooled @ w_t + b
    mu = jnp.mean(z, axis=0, keepdims=True)
    var = jnp.mean((z - mu) ** 2, axis=0, keepdims=True)
    z_hat = (z - mu) * lax.rsqrt(var + eps)
    return (gamma * z_hat + beta)[None, :, :]


if __name__ == "__main__":
    key = jax.random.PRNGKey(0)

    # Small, shape-consistent stand-ins for ResNet50 numbers
    # (real: C=2048 channels, S=7*7=49 spatial; here 256 channels, 4x4).
    B, C, H, W = 4, 256, 4, 4
    embed_size = 32

    k_feat, k_w = jax.random.split(key)

    # Layer4-style feature map (post-ReLU, so non-negative like real ResNet).
    feat_map = jax.nn.relu(
        jax.random.normal(k_feat, (B, C, H, W), dtype=jnp.float32))

    # self.embed.weight.data.normal_(0, 0.02); bias.fill_(0)
    w = 0.02 * jax.random.normal(k_w, (embed_size, C), dtype=jnp.float32)
    w_t = w.T                                   # (C, E)
    b = jnp.zeros((embed_size,), dtype=jnp.float32)

    # BatchNorm1d defaults: weight=1, bias=0.
    gamma = jnp.ones((embed_size,), dtype=jnp.float32)
    beta = jnp.zeros((embed_size,), dtype=jnp.float32)

    ref = encoder_cnn_tail_ref(feat_map, w_t, b, gamma, beta)

    # tc=128 -> 2 grid steps: exercises the accumulate / init / finalize path.
    # 1) default bf16 streaming (the fast path): loose tolerance vs f32 ref.
    out_bf16 = encoder_cnn_tail(feat_map, w_t, b, gamma, beta, tc=128)
    jax.block_until_ready(out_bf16)
    assert out_bf16.shape == (1, B, embed_size), out_bf16.shape
    assert jnp.all(jnp.isfinite(out_bf16))
    assert jnp.allclose(out_bf16, ref, atol=2e-1, rtol=2e-1), \
        float(jnp.max(jnp.abs(out_bf16 - ref)))

    # 2) f32 streaming: tight numerical check against the reference.
    out_f32 = encoder_cnn_tail(feat_map, w_t, b, gamma, beta,
                               tc=128, stream_dtype=jnp.float32)
    jax.block_until_ready(out_f32)
    assert jnp.allclose(out_f32, ref, atol=1e-4, rtol=1e-4), \
        float(jnp.max(jnp.abs(out_f32 - ref)))

    print("KERNEL_OK")
</pallas_src>

<mosaic_0001>
module attributes {stable_mosaic.version = 11 : i64} {
  func.func @encoder_tail_kernel(%arg0: i32, %arg1: memref<4x16x128xbf16, #tpu.memory_space<vmem>>, %arg2: memref<128x32xbf16, #tpu.memory_space<vmem>>, %arg3: memref<1x32xf32, #tpu.memory_space<vmem>>, %arg4: memref<1x32xf32, #tpu.memory_space<vmem>>, %arg5: memref<1x32xf32, #tpu.memory_space<vmem>>, %arg6: memref<4x32xf32, #tpu.memory_space<vmem>>, %arg7: memref<4x32xf32, #tpu.memory_space<vmem>>) attributes {dimension_semantics = [#tpu.dimension_semantics<arbitrary>], iteration_bounds = array<i64: 2>, scalar_prefetch = 0 : i64, scratch_operands = 1 : i64, tpu.core_type = #tpu.core_type<tc>, window_params = [{transform_indices = @transform_0, window_bounds = array<i64: 4, 16, 128>}, {transform_indices = @transform_1, window_bounds = array<i64: 128, 32>}, {pipeline_mode = #tpu.pipeline_mode<synchronous>, transform_indices = @transform_2, window_bounds = array<i64: 1, 32>}, {pipeline_mode = #tpu.pipeline_mode<synchronous>, transform_indices = @transform_3, window_bounds = array<i64: 1, 32>}, {pipeline_mode = #tpu.pipeline_mode<synchronous>, transform_indices = @transform_4, window_bounds = array<i64: 1, 32>}, {pipeline_mode = #tpu.pipeline_mode<synchronous>, transform_indices = @transform_5, window_bounds = array<i64: 4, 32>}]} {
    %c0_i32 = arith.constant 0 : i32
    %0 = arith.cmpi eq, %arg0, %c0_i32 : i32
    %1 = arith.extui %0 : i1 to i32
    %c0_i32_0 = arith.constant 0 : i32
    %2 = arith.cmpi ne, %1, %c0_i32_0 : i32
    scf.if %2 {
      %cst_11 = arith.constant 0.000000e+00 : f32
      %15 = vector.broadcast %cst_11 : f32 to vector<4x32xf32>
      %c0_12 = arith.constant 0 : index
      %c0_13 = arith.constant 0 : index
      %16 = vector.load %arg7[%c0_12, %c0_13] : memref<4x32xf32, #tpu.memory_space<vmem>>, vector<4x32xf32>
      tpu.vector_store %arg7[%c0_12, %c0_13], %15 {strides = array<i32>} : memref<4x32xf32, #tpu.memory_space<vmem>>, vector<4x32xf32>,
    } else {
    }
    %c0 = arith.constant 0 : index
    %c0_1 = arith.constant 0 : index
    %c0_2 = arith.constant 0 : index
    %3 = vector.load %arg1[%c0, %c0_1, %c0_2] : memref<4x16x128xbf16, #tpu.memory_space<vmem>>, vector<4x16x128xbf16>
    %4 = arith.extf %3 : vector<4x16x128xbf16> to vector<4x16x128xf32>
    %cst = arith.constant dense<0.000000e+00> : vector<4x128xf32>
    %5 = vector.multi_reduction <add>, %4, %cst [1] : vector<4x16x128xf32> to vector<4x128xf32>
    %c0_3 = arith.constant 0 : index
    %c0_4 = arith.constant 0 : index
    %6 = vector.load %arg7[%c0_3, %c0_4] : memref<4x32xf32, #tpu.memory_space<vmem>>, vector<4x32xf32>
    %c0_5 = arith.constant 0 : index
    %c0_6 = arith.constant 0 : index
    %7 = vector.load %arg2[%c0_5, %c0_6] : memref<128x32xbf16, #tpu.memory_space<vmem>>, vector<128x32xbf16>
    %8 = arith.extf %7 : vector<128x32xbf16> to vector<128x32xf32>
    %cst_7 = arith.constant dense<0.000000e+00> : vector<4x32xf32>
    %9 = tpu.matmul %5, %8, %cst_7 {dimension_numbers = #tpu.dot_dimension_numbers<[1], [0], [0], [1], [0, 0, 1, 1], [], []>} : vector<4x128xf32>, vector<128x32xf32>, vector<4x32xf32> -> vector<4x32xf32>
    %10 = arith.addf %6, %9 : vector<4x32xf32>
    %c0_8 = arith.constant 0 : index
    %c0_9 = arith.constant 0 : index
    %11 = vector.load %arg7[%c0_8, %c0_9] : memref<4x32xf32, #tpu.memory_space<vmem>>, vector<4x32xf32>
    tpu.vector_store %arg7[%c0_8, %c0_9], %10 {strides = array<i32>} : memref<4x32xf32, #tpu.memory_space<vmem>>, vector<4x32xf32>,
    %c1_i32 = arith.constant 1 : i32
    %12 = arith.cmpi eq, %arg0, %c1_i32 : i32
    %13 = arith.extui %12 : i1 to i32
    %c0_i32_10 = arith.constant 0 : i32
    %14 = arith.cmpi ne, %13, %c0_i32_10 : i32
    scf.if %14 {
      %c0_11 = arith.constant 0 : index
      %c0_12 = arith.constant 0 : index
      %15 = vector.load %arg7[%c0_11, %c0_12] : memref<4x32xf32, #tpu.memory_space<vmem>>, vector<4x32xf32>
      %cst_13 = arith.constant 6.250000e-02 : f32
      %16 = vector.broadcast %cst_13 : f32 to vector<4x32xf32>
      %17 = arith.mulf %15, %16 : vector<4x32xf32>
      %c0_14 = arith.constant 0 : index
      %c0_15 = arith.constant 0 : index
      %18 = vector.load %arg3[%c0_14, %c0_15] : memref<1x32xf32, #tpu.memory_space<vmem>>, vector<1x32xf32>
      %19 = vector.broadcast %18 : vector<1x32xf32> to vector<4x32xf32>
      %20 = arith.addf %17, %19 : vector<4x32xf32>
      %cst_16 = arith.constant dense<0.000000e+00> : vector<32xf32>
      %21 = vector.multi_reduction <add>, %20, %cst_16 [0] : vector<4x32xf32> to vector<32xf32>
      %22 = vector.shape_cast %21 : vector<32xf32> to vector<1x32xf32>
      %cst_17 = arith.constant 4.000000e+00 : f32
      %23 = vector.broadcast %cst_17 : f32 to vector<1x32xf32>
      %24 = arith.divf %22, %23 : vector<1x32xf32>
      %25 = vector.broadcast %24 : vector<1x32xf32> to vector<4x32xf32>
      %26 = arith.subf %20, %25 : vector<4x32xf32>
      %27 = arith.mulf %26, %26 : vector<4x32xf32>
      %cst_18 = arith.constant dense<0.000000e+00> : vector<32xf32>
      %28 = vector.multi_reduction <add>, %27, %cst_18 [0] : vector<4x32xf32> to vector<32xf32>
      %29 = vector.shape_cast %28 : vector<32xf32> to vector<1x32xf32>
      %cst_19 = arith.constant 4.000000e+00 : f32
      %30 = vector.broadcast %cst_19 : f32 to vector<1x32xf32>
      %31 = arith.divf %29, %30 : vector<1x32xf32>
      %cst_20 = arith.constant 9.99999974E-6 : f32
      %32 = vector.broadcast %cst_20 : f32 to vector<1x32xf32>
      %33 = arith.addf %31, %32 : vector<1x32xf32>
      %34 = math.rsqrt %33 : vector<1x32xf32>
      %35 = vector.broadcast %34 : vector<1x32xf32> to vector<4x32xf32>
      %36 = arith.mulf %26, %35 : vector<4x32xf32>
      %c0_21 = arith.constant 0 : index
      %c0_22 = arith.constant 0 : index
      %37 = vector.load %arg4[%c0_21, %c0_22] : memref<1x32xf32, #tpu.memory_space<vmem>>, vector<1x32xf32>
      %38 = vector.broadcast %37 : vector<1x32xf32> to vector<4x32xf32>
      %39 = arith.mulf %38, %36 : vector<4x32xf32>
      %c0_23 = arith.constant 0 : index
      %c0_24 = arith.constant 0 : index
      %40 = vector.load %arg5[%c0_23, %c0_24] : memref<1x32xf32, #tpu.memory_space<vmem>>, vector<1x32xf32>
      %41 = vector.broadcast %40 : vector<1x32xf32> to vector<4x32xf32>
      %42 = arith.addf %39, %41 : vector<4x32xf32>
      %c0_25 = arith.constant 0 : index
      %c0_26 = arith.constant 0 : index
      %43 = vector.load %arg6[%c0_25, %c0_26] : memref<4x32xf32, #tpu.memory_space<vmem>>, vector<4x32xf32>
      tpu.vector_store %arg6[%c0_25, %c0_26], %42 {strides = array<i32>} : memref<4x32xf32, #tpu.memory_space<vmem>>, vector<4x32xf32>,
    } else {
    }
    return
  }
  func.func @transform_0(%arg0: i32) -> (i32, i32, i32) {
    %c0_i32 = arith.constant 0 : i32
    %c0_i32_0 = arith.constant 0 : i32
    %c0_i32_1 = arith.constant 0 : i32
    return %c0_i32, %c0_i32_0, %arg0 : i32, i32, i32
  }
  func.func @transform_1(%arg0: i32) -> (i32, i32) {
    %c0_i32 = arith.constant 0 : i32
    %c0_i32_0 = arith.constant 0 : i32
    return %arg0, %c0_i32 : i32, i32
  }
  func.func @transform_2(%arg0: i32) -> (i32, i32) {
    %c0_i32 = arith.constant 0 : i32
    %c0_i32_0 = arith.constant 0 : i32
    %c0_i32_1 = arith.constant 0 : i32
    return %c0_i32, %c0_i32_0 : i32, i32
  }
  func.func @transform_3(%arg0: i32) -> (i32, i32) {
    %c0_i32 = arith.constant 0 : i32
    %c0_i32_0 = arith.constant 0 : i32
    %c0_i32_1 = arith.constant 0 : i32
    return %c0_i32, %c0_i32_0 : i32, i32
  }
  func.func @transform_4(%arg0: i32) -> (i32, i32) {
    %c0_i32 = arith.constant 0 : i32
    %c0_i32_0 = arith.constant 0 : i32
    %c0_i32_1 = arith.constant 0 : i32
    return %c0_i32, %c0_i32_0 : i32, i32
  }
  func.func @transform_5(%arg0: i32) -> (i32, i32) {
    %c0_i32 = arith.constant 0 : i32
    %c0_i32_0 = arith.constant 0 : i32
    %c0_i32_1 = arith.constant 0 : i32
    return %c0_i32, %c0_i32_0 : i32, i32
  }
}

</mosaic_0001>

<llo_original>
// kernel: tpu_custom_call.1
$region0: #{tpu_custom_call.1}
  #allocation0 [shape = 'u32[]', space=smem, size = 0x4, offset = 0x4, fixed_abs, tag = 'smem constant byte address 0x4 - core index']
  #allocation1 [shape = 'u32[144,128]{1,0:T(1,128)}', space=vmem, size = 0x12000, scoped, tag = 'internal scratch']
  #allocation2 [shape = 'f32[4,32]{1,0:T(4,128)}', space=vmem, size = 0x800, scoped, tag = 'scratch operand']
  %s0 = inlined_call_operand.vmem [shape: bf16[4,16,256], index: 0, kind: input, shape index: {}]
  %s1 = inlined_call_operand.vmem [shape: bf16[256,32], index: 1, kind: input, shape index: {}]
  %s2 = inlined_call_operand.vmem [shape: f32[1,32], index: 2, kind: input, shape index: {}]
  %s3 = inlined_call_operand.vmem [shape: f32[1,32], index: 3, kind: input, shape index: {}]
  %s4 = inlined_call_operand.vmem [shape: f32[1,32], index: 4, kind: input, shape index: {}]
  %s5 = inlined_call_operand.hbm [shape: f32[4,32], index: 5, kind: output, shape index: {}]
  %s6 = sld [smem:[#allocation0]]
  $region102: #{tpu_custom_call.1} parent=0
    _
  %s8 = ssub.s32 1, %s6
  %s9 = scalar_select 0, %s8, %s6
  $region1: #{tpu_custom_call.1} parent=0
    #allocation3 [shape = 'u8[32768]{0}', space=vmem, size = 0x8000, scoped, tag = 'input window, operand 0']
    #allocation4 [shape = 'u8[2048]{0}', space=vmem, size = 0x800, scoped, tag = 'output window, operand 0, single buffered']
    #allocation5 [shape = 's32[2]{0}', space=sflag, size = 0x8, scoped, tag = 'scoped memory for tpu_custom_call.1']
    %10 = vsyncpa [#allocation5], 0
    loop: start=0, step=1, limit=4
    $region2: #{tpu_custom_call.1} parent=1 // loop_pre_header
      _
    $region3: #{tpu_custom_call.1} parent=1 // loop_header
      %s12 = sphi 0, %s16
      %p13 = scmp.ge.s32.totalorder %s12, 4
      %s22 = sphi 0, %s24
      %s25 = sphi 0, %s22
      %s26 = sphi 0, %s25
      %s42 = sphi 0, %s26
      %s48 = sphi 0, %s50
      %s51 = sphi 0, %s48
      %s52 = sphi 0, %s51
      %s68 = sphi 0, %s52
      %s72 = sphi 0, %s72
      %s74 = sphi 0, %s72
      %s75 = sphi 0, %s74
      %s89 = sphi 0, %s75
      %s93 = sphi 0, %s93
      %s95 = sphi 0, %s93
      %s96 = sphi 0, %s95
      %s110 = sphi 0, %s96
      %s114 = sphi 0, %s114
      %s116 = sphi 0, %s114
      %s117 = sphi 0, %s116
      %s131 = sphi 0, %s117
      %s135 = sphi 0, %s135
      %s137 = sphi 0, %s135
      %s138 = sphi 0, %s137
      %s152 = sphi 0, %s138
    $region4: #{tpu_custom_call.1} parent=1 // loop_header_branch
      %15 = sbr.rel (%p13) target = $region8
    $region5: #{tpu_custom_call.1} parent=1 // loop_body
      %s17 = ssub.s32 %s12, 1
      %s18 = ssub.s32 %s12, 2
      %s19 = sadd.s32 %s12, 1
      %s20 = ssub.s32 %s12, %s19
      %p21 = scmp.eq.s32.totalorder %s20, 0
      %s23 = sadd.s32 %s22, 1
      %s24 = scalar_select %p21, %s22, %s23
      %p27 = pneg %p21
      %p28 = scmp.eq.s32.totalorder %s12, 1
      %p29 = por %p27, %p28
      %p30 = scmp.ne.s32.totalorder %s22, %s25
      %p31 = scmp.eq.s32.totalorder %s12, 0
      %p32 = por %p30, %p31
      %p33 = scmp.ne.s32.totalorder %s22, %s25
      %p34 = scmp.eq.s32.totalorder %s17, 1
      %p35 = por %p33, %p34
      %p36 = scmp.ne.s32.totalorder %s25, %s26
      %p37 = scmp.eq.s32.totalorder %s17, 0
      %p38 = por %p36, %p37
      %p39 = scmp.ne.s32.totalorder %s25, %s26
      %p40 = scmp.eq.s32.totalorder %s18, 1
      %p41 = por %p39, %p40
      %p43 = scmp.ne.s32.totalorder %s26, %s42
      %p44 = scmp.eq.s32.totalorder %s18, 0
      %p45 = por %p43, %p44
      %s46 = ssub.s32 %s12, %s19
      %p47 = scmp.eq.s32.totalorder %s46, 0
      %s49 = sadd.s32 %s48, 1
      %s50 = scalar_select %p47, %s48, %s49
      %p53 = pneg %p47
      %p54 = scmp.eq.s32.totalorder %s12, 1
      %p55 = por %p53, %p54
      %p56 = scmp.ne.s32.totalorder %s48, %s51
      %p57 = scmp.eq.s32.totalorder %s12, 0
      %p58 = por %p56, %p57
      %p59 = scmp.ne.s32.totalorder %s48, %s51
      %p60 = scmp.eq.s32.totalorder %s17, 1
      %p61 = por %p59, %p60
      %p62 = scmp.ne.s32.totalorder %s51, %s52
      %p63 = scmp.eq.s32.totalorder %s17, 0
      %p64 = por %p62, %p63
      %p65 = scmp.ne.s32.totalorder %s51, %s52
      %p66 = scmp.eq.s32.totalorder %s18, 1
      %p67 = por %p65, %p66
      %p69 = scmp.ne.s32.totalorder %s52, %s68
      %p70 = scmp.eq.s32.totalorder %s18, 0
      %p71 = por %p69, %p70
      %s73 = sadd.s32 %s72, 1
      %p76 = scmp.eq.s32.totalorder %s12, 1
      %p77 = scmp.ne.s32.totalorder %s72, %s74
      %p78 = scmp.eq.s32.totalorder %s12, 0
      %p79 = por %p77, %p78
      %p80 = scmp.ne.s32.totalorder %s72, %s74
      %p81 = scmp.eq.s32.totalorder %s17, 1
      %p82 = por %p80, %p81
      %p83 = scmp.ne.s32.totalorder %s74, %s75
      %p84 = scmp.eq.s32.totalorder %s17, 0
      %p85 = por %p83, %p84
      %p86 = scmp.ne.s32.totalorder %s74, %s75
      %p87 = scmp.eq.s32.totalorder %s18, 1
      %p88 = por %p86, %p87
      %p90 = scmp.ne.s32.totalorder %s75, %s89
      %p91 = scmp.eq.s32.totalorder %s18, 0
      %p92 = por %p90, %p91
      %s94 = sadd.s32 %s93, 1
      %p97 = scmp.eq.s32.totalorder %s12, 1
      %p98 = scmp.ne.s32.totalorder %s93, %s95
      %p99 = scmp.eq.s32.totalorder %s12, 0
      %p100 = por %p98, %p99
      %p101 = scmp.ne.s32.totalorder %s93, %s95
      %p102 = scmp.eq.s32.totalorder %s17, 1
      %p103 = por %p101, %p102
      %p104 = scmp.ne.s32.totalorder %s95, %s96
      %p105 = scmp.eq.s32.totalorder %s17, 0
      %p106 = por %p104, %p105
      %p107 = scmp.ne.s32.totalorder %s95, %s96
      %p108 = scmp.eq.s32.totalorder %s18, 1
      %p109 = por %p107, %p108
      %p111 = scmp.ne.s32.totalorder %s96, %s110
      %p112 = scmp.eq.s32.totalorder %s18, 0
      %p113 = por %p111, %p112
      %s115 = sadd.s32 %s114, 1
      %p118 = scmp.eq.s32.totalorder %s12, 1
      %p119 = scmp.ne.s32.totalorder %s114, %s116
      %p120 = scmp.eq.s32.totalorder %s12, 0
      %p121 = por %p119, %p120
      %p122 = scmp.ne.s32.totalorder %s114, %s116
      %p123 = scmp.eq.s32.totalorder %s17, 1
      %p124 = por %p122, %p123
      %p125 = scmp.ne.s32.totalorder %s116, %s117
      %p126 = scmp.eq.s32.totalorder %s17, 0
      %p127 = por %p125, %p126
      %p128 = scmp.ne.s32.totalorder %s116, %s117
      %p129 = scmp.eq.s32.totalorder %s18, 1
      %p130 = por %p128, %p129
      %p132 = scmp.ne.s32.totalorder %s117, %s131
      %p133 = scmp.eq.s32.totalorder %s18, 0
      %p134 = por %p132, %p133
      %s136 = sadd.s32 %s135, 1
      %p139 = scmp.eq.s32.totalorder %s12, 1
      %p140 = scmp.ne.s32.totalorder %s135, %s137
      %p141 = scmp.eq.s32.totalorder %s12, 0
      %p142 = por %p140, %p141
      %p143 = scmp.ne.s32.totalorder %s135, %s137
      %p144 = scmp.eq.s32.totalorder %s17, 1
      %p145 = por %p143, %p144
      %p146 = scmp.ne.s32.totalorder %s137, %s138
      %p147 = scmp.eq.s32.totalorder %s17, 0
      %p148 = por %p146, %p147
      %p149 = scmp.ne.s32.totalorder %s137, %s138
      %p150 = scmp.eq.s32.totalorder %s18, 1
      %p151 = por %p149, %p150
      %p153 = scmp.ne.s32.totalorder %s138, %s152
      %p154 = scmp.eq.s32.totalorder %s18, 0
      %p155 = por %p153, %p154
      %p156 = scmp.le.s32.totalorder 1, %s12
      %p157 = scmp.lt.s32.totalorder %s12, 3
      %p158 = pnand %p156, %p157
      %p159 = pneg %p158
      // Predicated region
      $region9: #{tpu_custom_call.1} parent=5 // pred_check
        _
      $region10: #{tpu_custom_call.1} parent=5 // pred_check_branch
        %161 = sbr.rel (%p158) target = $region12
      $region11: #{tpu_custom_call.1} parent=5 // pred_region
        %s162 = ssub.s32 %s12, 1
        // Predicated region
        $region13: #{tpu_custom_call.1} parent=11 // pred_check
          %p163 = pneg %p85
        $region14: #{tpu_custom_call.1} parent=11 // pred_check_branch
          %165 = sbr.rel (%p163) target = $region16
        $region15: #{tpu_custom_call.1} parent=11 // pred_region
          _
        $region16: #{tpu_custom_call.1} parent=11 // pred_fallthru
          _
        // Predicated region
        $region17: #{tpu_custom_call.1} parent=11 // pred_check
          %p166 = pneg %p106
        $region18: #{tpu_custom_call.1} parent=11 // pred_check_branch
          %168 = sbr.rel (%p166) target = $region20
        $region19: #{tpu_custom_call.1} parent=11 // pred_region
          _
        $region20: #{tpu_custom_call.1} parent=11 // pred_fallthru
          _
        // Predicated region
        $region21: #{tpu_custom_call.1} parent=11 // pred_check
          %p169 = pneg %p127
        $region22: #{tpu_custom_call.1} parent=11 // pred_check_branch
          %171 = sbr.rel (%p169) target = $region24
        $region23: #{tpu_custom_call.1} parent=11 // pred_region
          _
        $region24: #{tpu_custom_call.1} parent=11 // pred_fallthru
          _
      $region12: #{tpu_custom_call.1} parent=5 // pred_fallthru
        _
      %p172 = scmp.lt.s32.totalorder %s12, 2
      // Predicated region
      $region25: #{tpu_custom_call.1} parent=5 // pred_check
        %p173 = pneg %p172
      $region26: #{tpu_custom_call.1} parent=5 // pred_check_branch
        %175 = sbr.rel (%p173) target = $region28
      $region27: #{tpu_custom_call.1} parent=5 // pred_region
        // Predicated region
        $region29: #{tpu_custom_call.1} parent=27 // pred_check
          %p176 = pneg %p32
        $region30: #{tpu_custom_call.1} parent=27 // pred_check_branch
          %178 = sbr.rel (%p176) target = $region32
        $region31: #{tpu_custom_call.1} parent=27 // pred_region
          %s179 = sand.u32 %s22, 1
          %s180 = sand.u32 %s22, 1
          %s181 = smul.addr %s180, 32
          %s182 = scalar_lea.vmem [#allocation3], %s181
          %s183 = smul.addr %s12, 4
          %s184 = scalar_lea.vmem %s0, %s183
          // Predicated region
          $region33: #{tpu_custom_call.1} parent=31 // pred_check
            _
          $region34: #{tpu_custom_call.1} parent=31 // pred_check_branch
            %186 = sbr.rel (0) target = $region36
          $region35: #{tpu_custom_call.1} parent=31 // pred_region
            // Predicated region
            $region37: #{tpu_custom_call.1} parent=35 // pred_check
              _
            $region38: #{tpu_custom_call.1} parent=35 // pred_check_branch
              %188 = sbr.rel target = $region40
            $region39: #{tpu_custom_call.1} parent=35 // pred_region
              // Predicated region
              $region52: #{tpu_custom_call.1} parent=39 // pred_check
                _
              $region53: #{tpu_custom_call.1} parent=39 // pred_check_branch
                %218 = sbr.rel (0) target = $region55
              $region54: #{tpu_custom_call.1} parent=39 // pred_region
                loop: start=0, step=1, limit=1
                $region56: #{tpu_custom_call.1} parent=54 // loop_pre_header
                  _
                $region57: #{tpu_custom_call.1} parent=54 // loop_header
                  %s220 = sphi 0, %s224
                  %p221 = scmp.ge.s32.totalorder %s220, 1
                  %s225 = sphi %s184, %s184
                  %s226 = sphi %s182, %s182
                $region58: #{tpu_custom_call.1} parent=54 // loop_header_branch
                  %223 = sbr.rel (%p221) target = $region62
                $region59: #{tpu_custom_call.1} parent=54 // loop_body
                  _
                $region60: #{tpu_custom_call.1} parent=54 // loop_footer
                  %s224 = sadd.s32 1, %s220
                $region61: #{tpu_custom_call.1} parent=54 // loop_footer_branch
                  %219 = sbr.rel target = $region57
                $region62: #{tpu_custom_call.1} parent=54 // loop_exit
                  _
                %s228 = ssub.s32 16, 1
                loop: start=0, step=1, limit=1
                $region63: #{tpu_custom_call.1} parent=54 // loop_pre_header
                  _
                $region64: #{tpu_custom_call.1} parent=54 // loop_header
                  %s230 = sphi 0, %s234
                  %p231 = scmp.ge.s32.totalorder %s230, 1
                  %s235 = sphi %s184, %s184
                  %s236 = sphi %s182, %s182
                $region65: #{tpu_custom_call.1} parent=54 // loop_header_branch
                  %233 = sbr.rel (%p231) target = $region69
                $region66: #{tpu_custom_call.1} parent=54 // loop_body
                  %v237 = vld [vmem:[%s235] sm:%s228]
                  %238 = vst [vmem:[%s236] sm:%s228] %v237
                  %v239 = vld [vmem:[%s235 + $0x8] sm:%s228]
                  %240 = vst [vmem:[%s236 + $0x4] sm:%s228] %v239
                  %v241 = vld [vmem:[%s235 + $0x10] sm:%s228]
                  %242 = vst [vmem:[%s236 + $0x8] sm:%s228] %v241
                  %v243 = vld [vmem:[%s235 + $0x18] sm:%s228]
                  %244 = vst [vmem:[%s236 + $0xc] sm:%s228] %v243
                  %v245 = vld [vmem:[%s235 + $0x20] sm:%s228]
                  %246 = vst [vmem:[%s236 + $0x10] sm:%s228] %v245
                  %v247 = vld [vmem:[%s235 + $0x28] sm:%s228]
                  %248 = vst [vmem:[%s236 + $0x14] sm:%s228] %v247
                  %v249 = vld [vmem:[%s235 + $0x30] sm:%s228]
                  %250 = vst [vmem:[%s236 + $0x18] sm:%s228] %v249
                  %v251 = vld [vmem:[%s235 + $0x38] sm:%s228]
                  %252 = vst [vmem:[%s236 + $0x1c] sm:%s228] %v251
                $region67: #{tpu_custom_call.1} parent=54 // loop_footer
                  %s234 = sadd.s32 1, %s230
                $region68: #{tpu_custom_call.1} parent=54 // loop_footer_branch
                  %229 = sbr.rel target = $region64
                $region69: #{tpu_custom_call.1} parent=54 // loop_exit
                  _
              $region55: #{tpu_custom_call.1} parent=39 // pred_fallthru
                _
            $region40: #{tpu_custom_call.1} parent=35 // pred_fallthru
              _
            // Predicated region
            $region41: #{tpu_custom_call.1} parent=35 // pred_check
              _
            $region42: #{tpu_custom_call.1} parent=35 // pred_check_branch
              %190 = sbr.rel (0) target = $region44
            $region43: #{tpu_custom_call.1} parent=35 // pred_region
              %s192 = ssub.s32 16, 1
              loop: start=0, step=1, limit=1
              $region45: #{tpu_custom_call.1} parent=43 // loop_pre_header
                _
              $region46: #{tpu_custom_call.1} parent=43 // loop_header
                %s194 = sphi 0, %s198
                %p195 = scmp.ge.s32.totalorder %s194, 1
                %s199 = sphi %s184, %s184
                %s200 = sphi %s182, %s182
              $region47: #{tpu_custom_call.1} parent=43 // loop_header_branch
                %197 = sbr.rel (%p195) target = $region51
              $region48: #{tpu_custom_call.1} parent=43 // loop_body
                %v201 = vld [vmem:[%s199] sm:%s192]
                %202 = vst [vmem:[%s200] sm:%s192] %v201
                %v203 = vld [vmem:[%s199 + $0x8] sm:%s192]
                %204 = vst [vmem:[%s200 + $0x4] sm:%s192] %v203
                %v205 = vld [vmem:[%s199 + $0x10] sm:%s192]
                %206 = vst [vmem:[%s200 + $0x8] sm:%s192] %v205
                %v207 = vld [vmem:[%s199 + $0x18] sm:%s192]
                %208 = vst [vmem:[%s200 + $0xc] sm:%s192] %v207
                %v209 = vld [vmem:[%s199 + $0x20] sm:%s192]
                %210 = vst [vmem:[%s200 + $0x10] sm:%s192] %v209
                %v211 = vld [vmem:[%s199 + $0x28] sm:%s192]
                %212 = vst [vmem:[%s200 + $0x14] sm:%s192] %v211
                %v213 = vld [vmem:[%s199 + $0x30] sm:%s192]
                %214 = vst [vmem:[%s200 + $0x18] sm:%s192] %v213
                %v215 = vld [vmem:[%s199 + $0x38] sm:%s192]
                %216 = vst [vmem:[%s200 + $0x1c] sm:%s192] %v215
              $region49: #{tpu_custom_call.1} parent=43 // loop_footer
                %s198 = sadd.s32 1, %s194
              $region50: #{tpu_custom_call.1} parent=43 // loop_footer_branch
                %193 = sbr.rel target = $region46
              $region51: #{tpu_custom_call.1} parent=43 // loop_exit
                _
            $region44: #{tpu_custom_call.1} parent=35 // pred_fallthru
              _
          $region36: #{tpu_custom_call.1} parent=31 // pred_fallthru
            _
          %253 = vnop
        $region32: #{tpu_custom_call.1} parent=27 // pred_fallthru
          _
        // Predicated region
        $region70: #{tpu_custom_call.1} parent=27 // pred_check
          %p254 = pneg %p58
        $region71: #{tpu_custom_call.1} parent=27 // pred_check_branch
          %256 = sbr.rel (%p254) target = $region73
        $region72: #{tpu_custom_call.1} parent=27 // pred_region
          %s257 = smul.u32 16, %s12
          %p258 = scmp.lt.s32.totalorder %s257, 31
          %s259 = scalar_select %p258, %s257, 31
          %s260 = smul.addr %s259, 4
          %s261 = scalar_lea.vmem %s1, %s260
          %s262 = smul.u32 16, %s12
        $region73: #{tpu_custom_call.1} parent=27 // pred_fallthru
          _
      $region28: #{tpu_custom_call.1} parent=5 // pred_fallthru
        _
      %p263 = scmp.le.s32.totalorder 1, %s12
      %p264 = scmp.lt.s32.totalorder %s12, 3
      %p265 = pnand %p263, %p264
      %p266 = pneg %p265
      // Predicated region
      $region74: #{tpu_custom_call.1} parent=5 // pred_check
        _
      $region75: #{tpu_custom_call.1} parent=5 // pred_check_branch
        %268 = sbr.rel (%p265) target = $region77
      $region76: #{tpu_custom_call.1} parent=5 // pred_region
        %s269 = ssub.s32 %s12, 1
        %s270 = sand.u32 %s25, 1
        %s271 = sand.u32 %s25, 1
        %s272 = smul.addr %s271, 32
        %s273 = scalar_lea.vmem [#allocation3], %s272
        // Predicated region
        $region78: #{tpu_custom_call.1} parent=76 // pred_check
          %p274 = pneg %p38
        $region79: #{tpu_custom_call.1} parent=76 // pred_check_branch
          %276 = sbr.rel (%p274) target = $region81
        $region80: #{tpu_custom_call.1} parent=76 // pred_region
          _
        $region81: #{tpu_custom_call.1} parent=76 // pred_fallthru
          _
        %s277 = sand.u32 %s25, 1
        %s278 = sand.u32 %s25, 1
        %s279 = smul.addr %s278, 32
        %s280 = scalar_lea.vmem [#allocation3], %s279
        %p281 = pneg %p38
        %p282 = pneg %p35
        %s283 = smul.u32 16, %s17
        %p284 = scmp.lt.s32.totalorder %s283, 31
        %s285 = scalar_select %p284, %s283, 31
        %s286 = smul.addr %s285, 4
        %s287 = scalar_lea.vmem %s1, %s286
        %p288 = pneg %p64
        %p289 = pneg %p61
        %p290 = pneg %p85
        %p291 = pneg %p82
        %p292 = pneg %p106
        %p293 = pneg %p103
        %p294 = pneg %p127
        %p295 = pneg %p124
        %p296 = pneg %p148
        %p297 = pneg %p145
        %s298 = smul.u32 16, %s17
        %p299 = scmp.lt.s32.totalorder %s298, 31
        %s300 = scalar_select %p299, %s298, 31
        %s301 = smul.addr %s300, 4
        %s302 = scalar_lea.vmem %s1, %s301
        %s303 = smul.u32 16, %s17
        %p304 = scmp.eq.s32.totalorder %s17, 0
        // Predicated region
        $region82: #{tpu_custom_call.1} parent=76 // pred_check
          %p305 = pneg %p304
        $region83: #{tpu_custom_call.1} parent=76 // pred_check_branch
          %307 = sbr.rel (%p305) target = $region85
        $region84: #{tpu_custom_call.1} parent=76 // pred_region
          %vm308 = vcmask 257024
          %309 = vst.msk [vmem:[#allocation2] sm:$0xf] %vm308, 0.0
        $region85: #{tpu_custom_call.1} parent=76 // pred_fallthru
          _
        %v310 = vld [vmem:[%s273] sm:$0xf]
        %v311 = vld [vmem:[%s273 + $0x4] sm:$0xf]
        %v312 = vld [vmem:[%s273 + $0x8] sm:$0xf]
        %v313 = vld [vmem:[%s273 + $0xc] sm:$0xf]
        %v314 = vld [vmem:[%s273 + $0x10] sm:$0xf]
        %v315 = vld [vmem:[%s273 + $0x14] sm:$0xf]
        %v316 = vld [vmem:[%s273 + $0x18] sm:$0xf]
        %v317 = vld [vmem:[%s273 + $0x1c] sm:$0xf]
        %v318 = vunpack.c.l.bf16 %v310
        %v319 = vunpack.c.l.bf16 %v311
        %v320 = vunpack.c.l.bf16 %v312
        %v321 = vunpack.c.l.bf16 %v313
        %v322 = vunpack.c.l.bf16 %v314
        %v323 = vunpack.c.l.bf16 %v315
        %v324 = vunpack.c.l.bf16 %v316
        %v325 = vunpack.c.l.bf16 %v317
        %v326 = vadd.f32 %v318, %v319
        %v327 = vrot.slane %v326, 4
        %v328 = vadd.f32 %v326, %v327
        %v329 = vrot.slane %v328, 2
        %v330 = vadd.f32 %v328, %v329
        %v331 = vrot.slane %v330, 1
        %v332 = vadd.f32 %v330, %v331
        %v333 = vadd.f32 %v320, %v321
        %v334 = vrot.slane %v333, 4
        %v335 = vadd.f32 %v333, %v334
        %v336 = vrot.slane %v335, 2
        %v337 = vadd.f32 %v335, %v336
        %v338 = vrot.slane %v337, 1
        %v339 = vadd.f32 %v337, %v338
        %v340 = vadd.f32 %v322, %v323
        %v341 = vrot.slane %v340, 4
        %v342 = vadd.f32 %v340, %v341
        %v343 = vrot.slane %v342, 2
        %v344 = vadd.f32 %v342, %v343
        %v345 = vrot.slane %v344, 1
        %v346 = vadd.f32 %v344, %v345
        %v347 = vadd.f32 %v324, %v325
        %v348 = vrot.slane %v347, 4
        %v349 = vadd.f32 %v347, %v348
        %v350 = vrot.slane %v349, 2
        %v351 = vadd.f32 %v349, %v350
        %v352 = vrot.slane %v351, 1
        %v353 = vadd.f32 %v351, %v352
        %v354 = vld [vmem:[#allocation2] sm:$0xf]
        %v355 = vld [vmem:[%s302] sm:$0xf]
        %v356 = vld [vmem:[%s302 + $0x4] sm:$0xf]
        %v357 = vld [vmem:[%s302 + $0x8] sm:$0xf]
        %v358 = vld [vmem:[%s302 + $0xc] sm:$0xf]
        %v359 = vld [vmem:[%s302 + $0x10] sm:$0xf]
        %v360 = vld [vmem:[%s302 + $0x14] sm:$0xf]
        %v361 = vld [vmem:[%s302 + $0x18] sm:$0xf]
        %v362 = vld [vmem:[%s302 + $0x1c] sm:$0xf]
        %v363 = vld [vmem:[%s302 + $0x20] sm:$0xf]
        %v364 = vld [vmem:[%s302 + $0x24] sm:$0xf]
        %v365 = vld [vmem:[%s302 + $0x28] sm:$0xf]
        %v366 = vld [vmem:[%s302 + $0x2c] sm:$0xf]
        %v367 = vld [vmem:[%s302 + $0x30] sm:$0xf]
        %v368 = vld [vmem:[%s302 + $0x34] sm:$0xf]
        %v369 = vld [vmem:[%s302 + $0x38] sm:$0xf]
        %v370 = vld [vmem:[%s302 + $0x3c] sm:$0xf]
        %v371 = vunpack.c.l.bf16 %v355
        %v372 = vunpack.c.l.bf16 %v356
        %v373 = vunpack.c.l.bf16 %v357
        %v374 = vunpack.c.l.bf16 %v358
        %v375 = vunpack.c.l.bf16 %v359
        %v376 = vunpack.c.l.bf16 %v360
        %v377 = vunpack.c.l.bf16 %v361
        %v378 = vunpack.c.l.bf16 %v362
        %v379 = vunpack.c.l.bf16 %v363
        %v380 = vunpack.c.l.bf16 %v364
        %v381 = vunpack.c.l.bf16 %v365
        %v382 = vunpack.c.l.bf16 %v366
        %v383 = vunpack.c.l.bf16 %v367
        %v384 = vunpack.c.l.bf16 %v368
        %v385 = vunpack.c.l.bf16 %v369
        %v386 = vunpack.c.l.bf16 %v370
        %vm391 = vcmask 1041409
        %v392 = vsel %vm391, %v339, %v332
        %vm393 = vcmask 1042434
        %v394 = vsel %vm393, %v346, %v392
        %vm395 = vcmask 1043459
        %v396 = vsel %vm395, %v353, %v394
        %398 = vmatprep.subr.mxu0 0.0
        %399 = vmatpush1.msra.mxu0 %v386
        %400 = vmatprep.subr.mxu0 0.0
        %401 = vmatpush1.msra.mxu0 %v385
        %402 = vmatprep.subr.mxu0 0.0
        %403 = vmatpush1.msra.mxu0 %v384
        %404 = vmatprep.subr.mxu0 0.0
        %405 = vmatpush1.msra.mxu0 %v383
        %406 = vmatprep.subr.mxu0 0.0
        %407 = vmatpush1.msra.mxu0 %v382
        %408 = vmatprep.subr.mxu0 0.0
        %409 = vmatpush1.msra.mxu0 %v381
        %410 = vmatprep.subr.mxu0 0.0
        %411 = vmatpush1.msra.mxu0 %v380
        %412 = vmatprep.subr.mxu0 0.0
        %413 = vmatpush1.msra.mxu0 %v379
        %414 = vmatprep.subr.mxu0 0.0
        %415 = vmatpush1.msra.mxu0 %v378
        %416 = vmatprep.subr.mxu0 0.0
        %417 = vmatpush1.msra.mxu0 %v377
        %418 = vmatprep.subr.mxu0 0.0
        %419 = vmatpush1.msra.mxu0 %v376
        %420 = vmatprep.subr.mxu0 0.0
        %421 = vmatpush1.msra.mxu0 %v375
        %422 = vmatprep.subr.mxu0 0.0
        %423 = vmatpush1.msra.mxu0 %v374
        %424 = vmatprep.subr.mxu0 0.0
        %425 = vmatpush1.msra.mxu0 %v373
        %426 = vmatprep.subr.mxu0 0.0
        %427 = vmatpush1.msra.mxu0 %v372
        %428 = vmatprep.subr.mxu0 0.0
        %429 = vmatpush1.msra.mxu0 %v371
        %430 = vmatprep.subr.mxu0 0.0
        %431 = vmatpush2.msra.mxu0 0.0
        %432 = vmatprep.subr.mxu0 0.0
        %433 = vmatpush2.msra.mxu0 0.0
        %434 = vmatprep.subr.mxu0 0.0
        %435 = vmatpush2.msra.mxu0 0.0
        %436 = vmatprep.subr.mxu0 0.0
        %437 = vmatpush2.msra.mxu0 0.0
        %438 = vmatprep.subr.mxu0 0.0
        %439 = vmatpush2.msra.mxu0 0.0
        %440 = vmatprep.subr.mxu0 0.0
        %441 = vmatpush2.msra.mxu0 0.0
        %442 = vmatprep.subr.mxu0 0.0
        %443 = vmatpush2.msra.mxu0 0.0
        %444 = vmatprep.subr.mxu0 0.0
        %445 = vmatpush2.msra.mxu0 0.0
        %446 = vmatprep.subr.mxu0 0.0
        %447 = vmatpush2.msra.mxu0 0.0
        %448 = vmatprep.subr.mxu0 0.0
        %449 = vmatpush2.msra.mxu0 0.0
        %450 = vmatprep.subr.mxu0 0.0
        %451 = vmatpush2.msra.mxu0 0.0
        %452 = vmatprep.subr.mxu0 0.0
        %453 = vmatpush2.msra.mxu0 0.0
        %454 = vmatprep.subr.mxu0 0.0
        %455 = vmatpush2.msra.mxu0 0.0
        %456 = vmatprep.subr.mxu0 0.0
        %457 = vmatpush2.msra.mxu0 0.0
        %458 = vmatprep.subr.mxu0 0.0
        %459 = vmatpush2.msra.mxu0 0.0
        %460 = vmatprep.subr.mxu0 0.0
        %461 = vmatpush2.msra.mxu0 0.0
        %462 = vmatprep.mubr.f32.mxu0 0.0
        %463 = vmatmul.mubr.f32.gmra.mxu0 %v396
        %v464 = vpop.f32.mrf.mxu0
        %v465 = vadd.f32 0.0, %v464
        %v466 = vpop.f32.mrf.mxu0
        %467 = vdwg.mxu0
        %v468 = vadd.f32 %v354, %v465
        %vm469 = vcmask 257024
        %470 = vst.msk [vmem:[#allocation2] sm:$0xf] %vm469, %v468
        %p471 = scmp.eq.s32.totalorder %s17, 1
        // Predicated region
        $region86: #{tpu_custom_call.1} parent=76 // pred_check
          %p472 = pneg %p471
        $region87: #{tpu_custom_call.1} parent=76 // pred_check_branch
          %474 = sbr.rel (%p472) target = $region89
        $region88: #{tpu_custom_call.1} parent=76 // pred_region
          %v475 = vld [vmem:[#allocation2] sm:$0xf]
          %v476 = vmul.f32 %v475, 0.0625
          %v477 = vld [vmem:[%s2] sm:$0x1]
          %v479 = vlaneseq
          %v480 = vshrl.u32 %v479, 7
          %v481 = vsub.s32 0, %v480
          %v482 = vrot.slane %v477, %v481
          %v484 = vadd.f32 %v476, %v482
          %v485 = vsel %vm469, %v484, 0.0
          %v486 = vrot.slane %v485, 4
          %v487 = vadd.f32 %v485, %v486
          %v488 = vrot.slane %v487, 2
          %v489 = vadd.f32 %v487, %v488
          %v490 = vrot.slane %v489, 1
          %v491 = vadd.f32 %v489, %v490
          %v492 = vrcp.pop 4.0
          %v493 = vmul.f32 %v491, %v492
          %v494 = vsub.f32 %v484, %v493
          %v495 = vmul.f32 %v494, %v494
          %v496 = vsel %vm469, %v495, 0.0
          %v497 = vrot.slane %v496, 4
          %v498 = vadd.f32 %v496, %v497
          %v499 = vrot.slane %v498, 2
          %v500 = vadd.f32 %v498, %v499
          %v501 = vrot.slane %v500, 1
          %v502 = vadd.f32 %v500, %v501
          %v503 = vmul.f32 %v502, %v492
          %v504 = vadd.f32 %v503, 1e-05
          %v505 = vrsqrt.pop %v504
          %v506 = vmul.f32 %v494, %v505
          %v507 = vld [vmem:[%s3] sm:$0x1]
          %v509 = vlaneseq
          %v510 = vshrl.u32 %v509, 7
          %v511 = vsub.s32 0, %v510
          %v512 = vrot.slane %v507, %v511
          %v514 = vmul.f32 %v512, %v506
          %v515 = vld [vmem:[%s4] sm:$0x1]
          %v517 = vlaneseq
          %v518 = vshrl.u32 %v517, 7
          %v519 = vsub.s32 0, %v518
          %v520 = vrot.slane %v515, %v519
          %v522 = vadd.f32 %v514, %v520
          %523 = vst.msk [vmem:[#allocation4] sm:$0xf] %vm469, %v522
        $region89: #{tpu_custom_call.1} parent=76 // pred_fallthru
          _
        // Predicated region
        $region90: #{tpu_custom_call.1} parent=76 // pred_check
          %p524 = pneg %p145
        $region91: #{tpu_custom_call.1} parent=76 // pred_check_branch
          %526 = sbr.rel (%p524) target = $region93
        $region92: #{tpu_custom_call.1} parent=76 // pred_region
          %s528 = ssub.s32 64, 64
          %529 = vsyncadd [#allocation5], %s528
          %s531 = sshll.u32 [#allocation4], 4
          %s532 = int_to_ptr.vmem [resolvable:$true] %s531
          %534 = dma.vmem_to_hbm [thread:$0]  %s532, 64, %s5, [#allocation5]
        $region93: #{tpu_custom_call.1} parent=76 // pred_fallthru
          _
        // Predicated region
        $region94: #{tpu_custom_call.1} parent=76 // pred_check
          %p535 = pneg %p145
        $region95: #{tpu_custom_call.1} parent=76 // pred_check_branch
          %537 = sbr.rel (%p535) target = $region97
        $region96: #{tpu_custom_call.1} parent=76 // pred_region
          %538 = dma.done [#allocation5], 64
        $region97: #{tpu_custom_call.1} parent=76 // pred_fallthru
          _
      $region77: #{tpu_custom_call.1} parent=5 // pred_fallthru
        _
      %p539 = scmp.le.s32.totalorder 2, %s12
      // Predicated region
      $region98: #{tpu_custom_call.1} parent=5 // pred_check
        %p540 = pneg %p539
      $region99: #{tpu_custom_call.1} parent=5 // pred_check_branch
        %542 = sbr.rel (%p540) target = $region101
      $region100: #{tpu_custom_call.1} parent=5 // pred_region
        %s543 = ssub.s32 %s12, 2
      $region101: #{tpu_custom_call.1} parent=5 // pred_fallthru
        _
    $region6: #{tpu_custom_call.1} parent=1 // loop_footer
      %s16 = sadd.s32 1, %s12
    $region7: #{tpu_custom_call.1} parent=1 // loop_footer_branch
      %11 = sbr.rel target = $region3
    $region8: #{tpu_custom_call.1} parent=1 // loop_exit
      _
    %544 = vsyncpa [#allocation5], 1
    %s545 = scalar_lea.sflag [#allocation5], 1
    %546 = vsyncpa %s545, 1

</llo_original>
